<compile_context>
chip_gen: v7x
topology: tpu7x:2x2x1
jax: 0.10.0
libtpu: 0.0.40
codegen_flags: <defaults>
</compile_context>

<pallas_src>
import jax
import jax.numpy as jnp
from jax.experimental import pallas as pl
from jax.experimental.pallas import tpu as pltpu


def _attention_kernel(x_ref, o_ref):
    # x_ref / o_ref: (S, tH) tile in VMEM (batch dim squeezed out).
    x = x_ref[...].astype(jnp.float32)                # f32 compute path
    m = jnp.max(x, axis=0, keepdims=True)             # (1, tH)  sublane reduce
    e = jnp.exp(x - m)                                # (S, tH)
    s = jnp.sum(e, axis=0, keepdims=True)             # (1, tH)  sublane reduce

    # EUP approx reciprocal + 2 Newton-Raphson steps -> ~f32-exact 1/s.
    # (These refinements run on the tiny (1, tH) vector; cost is negligible.)
    r = pl.reciprocal(s, approx=True)
    r = r * (2.0 - s * r)
    r = r * (2.0 - s * r)

    o_ref[...] = (e * r * x).astype(o_ref.dtype)      # softmax(x) * x


def _pick_h_tile(S, H, itemsize, budget_bytes=20 * 1024 * 1024):
    """Largest lane tile (multiple of 128, divides H, <= 1024) whose in-flight
    footprint fits a conservative VMEM budget that works on v5e/v6e/v7x."""
    if H % 128 != 0:
        # Last block dim must be a multiple of 128 OR the full array dim.
        # TODO(synk): for H < 128, a wrapper-side (B,S,H)->(S,B*H) transpose
        # would make stores lane-dense, but it adds extra XLA transpose passes
        # over HBM for this purely bandwidth-bound op, so it is skipped.
        return H
    # Per lane-column bytes: 2x double-buffered input + 2x double-buffered
    # output (native dtype) + ~3 f32 intermediates (x, e, result).
    per_lane_col = S * (4 * itemsize + 3 * 4)
    best = 128
    for t in range(128, min(H, 1024) + 1, 128):
        if H % t == 0 and t * per_lane_col <= budget_bytes:
            best = t
    return best
    # TODO(synk): if S alone is so large that even tH=128 blows the budget,
    # add a third "arbitrary" grid axis over S with an online-softmax
    # (running max / sum) accumulator in VMEM scratch.


def attention(x, *, h_tile=None, vmem_limit_bytes=32 * 1024 * 1024):
    """Pallas implementation of Attention.forward: softmax(x, dim=1) * x."""
    B, S, H = x.shape
    if h_tile is None:
        h_tile = _pick_h_tile(S, H, x.dtype.itemsize)
    assert H % h_tile == 0

    block = (pl.Squeezed(), S, h_tile)                 # kernel sees (S, tH)
    index_map = lambda b, h: (b, 0, h)

    return pl.pallas_call(
        _attention_kernel,
        out_shape=jax.ShapeDtypeStruct((B, S, H), x.dtype),
        grid_spec=pltpu.PrefetchScalarGridSpec(
            num_scalar_prefetch=0,
            grid=(B, H // h_tile),
            in_specs=[pl.BlockSpec(block, index_map)],
            out_specs=pl.BlockSpec(block, index_map),
        ),
        compiler_params=pltpu.CompilerParams(
            dimension_semantics=("parallel", "parallel"),
            vmem_limit_bytes=vmem_limit_bytes,
        ),
    )(x)


def attention_ref(x):
    # Pure-JAX reference matching the PyTorch module.
    w = jax.nn.softmax(x.astype(jnp.float32), axis=1)
    return (w * x.astype(jnp.float32)).astype(x.dtype)


if __name__ == "__main__":
    key = jax.random.PRNGKey(0)

    # Primary shape implied by the module's usage (small): B=2, S=8, H=32.
    B, S, H = 2, 8, 32
    x = jax.random.normal(key, (B, S, H), dtype=jnp.float32)
    out = jax.block_until_ready(attention(x))
    ref = attention_ref(x)
    assert out.shape == (B, S, H)
    assert jnp.allclose(out, ref, atol=1e-5, rtol=1e-5), "mismatch vs reference (small)"

    # Second small case with H a multiple of 128 to exercise the H-tiled path.
    k2 = jax.random.PRNGKey(1)
    x2 = jax.random.normal(k2, (2, 128, 256), dtype=jnp.float32)
    out2 = jax.block_until_ready(attention(x2, h_tile=128))
    ref2 = attention_ref(x2)
    assert jnp.allclose(out2, ref2, atol=1e-5, rtol=1e-5), "mismatch vs reference (tiled)"

    print("KERNEL_OK")
</pallas_src>

<mosaic_0001>
module attributes {stable_mosaic.version = 11 : i64} {
  func.func @_attention_kernel(%arg0: i32, %arg1: i32, %arg2: memref<1x8x32xf32, #tpu.memory_space<vmem>>, %arg3: memref<1x8x32xf32, #tpu.memory_space<vmem>>) attributes {dimension_semantics = [#tpu.dimension_semantics<parallel>, #tpu.dimension_semantics<parallel>], iteration_bounds = array<i64: 2, 1>, scalar_prefetch = 0 : i64, scratch_operands = 0 : i64, tpu.core_type = #tpu.core_type<tc>, window_params = [{transform_indices = @transform_0, window_bounds = array<i64: 1, 8, 32>}, {transform_indices = @transform_1, window_bounds = array<i64: 1, 8, 32>}]} {
    %c0 = arith.constant 0 : index
    %c0_0 = arith.constant 0 : index
    %c0_1 = arith.constant 0 : index
    %0 = vector.load %arg2[%c0, %c0_0, %c0_1] : memref<1x8x32xf32, #tpu.memory_space<vmem>>, vector<1x8x32xf32>
    %1 = vector.shape_cast %0 : vector<1x8x32xf32> to vector<8x32xf32>
    %cst = arith.constant dense<0xFF800000> : vector<32xf32>
    %2 = vector.multi_reduction <maximumf>, %1, %cst [0] : vector<8x32xf32> to vector<32xf32>
    %3 = vector.shape_cast %2 : vector<32xf32> to vector<1x32xf32>
    %4 = vector.broadcast %3 : vector<1x32xf32> to vector<8x32xf32>
    %5 = arith.subf %1, %4 : vector<8x32xf32>
    %6 = math.exp %5 : vector<8x32xf32>
    %cst_2 = arith.constant dense<0.000000e+00> : vector<32xf32>
    %7 = vector.multi_reduction <add>, %6, %cst_2 [0] : vector<8x32xf32> to vector<32xf32>
    %8 = vector.shape_cast %7 : vector<32xf32> to vector<1x32xf32>
    %9 = tpu.reciprocal %8 {approx = true} : vector<1x32xf32> -> vector<1x32xf32>
    %10 = arith.mulf %8, %9 : vector<1x32xf32>
    %cst_3 = arith.constant 2.000000e+00 : f32
    %11 = vector.broadcast %cst_3 : f32 to vector<1x32xf32>
    %12 = arith.subf %11, %10 : vector<1x32xf32>
    %13 = arith.mulf %9, %12 : vector<1x32xf32>
    %14 = arith.mulf %8, %13 : vector<1x32xf32>
    %cst_4 = arith.constant 2.000000e+00 : f32
    %15 = vector.broadcast %cst_4 : f32 to vector<1x32xf32>
    %16 = arith.subf %15, %14 : vector<1x32xf32>
    %17 = arith.mulf %13, %16 : vector<1x32xf32>
    %18 = vector.broadcast %17 : vector<1x32xf32> to vector<8x32xf32>
    %19 = arith.mulf %6, %18 : vector<8x32xf32>
    %20 = arith.mulf %19, %1 : vector<8x32xf32>
    %c0_5 = arith.constant 0 : index
    %c0_6 = arith.constant 0 : index
    %c0_7 = arith.constant 0 : index
    %21 = vector.load %arg3[%c0_5, %c0_6, %c0_7] : memref<1x8x32xf32, #tpu.memory_space<vmem>>, vector<1x8x32xf32>
    %22 = vector.shape_cast %21 : vector<1x8x32xf32> to vector<8x32xf32>
    %23 = vector.shape_cast %20 : vector<8x32xf32> to vector<1x8x32xf32>
    tpu.vector_store %arg3[%c0_5, %c0_6, %c0_7], %23 {strides = array<i32>} : memref<1x8x32xf32, #tpu.memory_space<vmem>>, vector<1x8x32xf32>,
    return
  }
  func.func @transform_0(%arg0: i32, %arg1: i32) -> (i32, i32, i32) {
    %c0_i32 = arith.constant 0 : i32
    %c0_i32_0 = arith.constant 0 : i32
    return %arg0, %c0_i32, %arg1 : i32, i32, i32
  }
  func.func @transform_1(%arg0: i32, %arg1: i32) -> (i32, i32, i32) {
    %c0_i32 = arith.constant 0 : i32
    %c0_i32_0 = arith.constant 0 : i32
    return %arg0, %c0_i32, %arg1 : i32, i32, i32
  }
}

</mosaic_0001>

<llo_original>
// kernel: tpu_custom_call.1
$region0: #{tpu_custom_call.1}
  #allocation0 [shape = 'u32[]', space=smem, size = 0x4, offset = 0x4, fixed_abs, tag = 'smem constant byte address 0x4 - core index']
  #allocation1 [shape = 'u32[144,128]{1,0:T(1,128)}', space=vmem, size = 0x12000, scoped, tag = 'internal scratch']
  %s0 = inlined_call_operand.hbm [shape: f32[2,8,32], index: 0, kind: input, shape index: {}]
  %s1 = inlined_call_operand.hbm [shape: f32[2,8,32], index: 1, kind: output, shape index: {}]
  %s2 = sld [smem:[#allocation0]]
  $region41: #{tpu_custom_call.1} parent=0
    _
  %s4 = ssub.s32 1, %s2
  %s5 = scalar_select 0, %s4, %s2
  $region1: #{tpu_custom_call.1} parent=0
    #allocation2 [shape = 'u8[8192]{0}', space=vmem, size = 0x2000, scoped, tag = 'input window, operand 0']
    #allocation3 [shape = 's32[2]{0}', space=sflag, size = 0x8, scoped, tag = 'scoped memory for tpu_custom_call.1']
    #allocation4 [shape = 's32[2]{0}', space=sflag, size = 0x8, scoped, tag = 'scoped memory for tpu_custom_call.1']
    #allocation5 [shape = 'u8[8192]{0}', space=vmem, size = 0x2000, scoped, tag = 'output window, operand 0']
    %6 = vsyncpa [#allocation3], 0
    %s7 = scalar_lea.sflag [#allocation3], 1
    %8 = vsyncpa %s7, 0
    %9 = vsyncpa [#allocation4], 0
    %s10 = scalar_lea.sflag [#allocation4], 1
    %11 = vsyncpa %s10, 0
    loop: start=0, step=1, limit=4
    $region2: #{tpu_custom_call.1} parent=1 // loop_pre_header
      _
    $region3: #{tpu_custom_call.1} parent=1 // loop_header
      %s13 = sphi 0, %s17
      %p14 = scmp.ge.s32.totalorder %s13, 4
      %s20 = sphi 0, %s32
      %s21 = sphi 0, %s28
      %s22 = sphi 0, %s20
      %s23 = sphi 0, %s21
      %s24 = sphi 0, %s22
      %s25 = sphi 0, %s23
      %s37 = sphi 0, %s39
      %s40 = sphi 0, %s37
      %s41 = sphi 0, %s40
      %s57 = sphi 0, %s41
      %s65 = sphi 0, %s67
      %s68 = sphi 0, %s65
      %s69 = sphi 0, %s68
      %s85 = sphi 0, %s69
    $region4: #{tpu_custom_call.1} parent=1 // loop_header_branch
      %16 = sbr.rel (%p14) target = $region8
    $region5: #{tpu_custom_call.1} parent=1 // loop_body
      %s18 = ssub.s32 %s13, 1
      %s19 = ssub.s32 %s13, 2
      %s26 = sadd.s32 1, %s21
      %p27 = scmp.ge.s32.totalorder %s26, 1
      %s28 = scalar_select %p27, 0, %s26
      %s29 = sadd.s32 1, %s20
      %s30 = scalar_select %p27, %s29, %s20
      %p31 = scmp.ge.s32.totalorder %s30, 2
      %s32 = scalar_select %p31, 0, %s30
      %s33 = ssub.s32 %s20, %s32
      %s34 = ssub.s32 %s21, %s28
      %s35 = sor.u32 %s33, %s34
      %p36 = scmp.eq.s32.totalorder %s35, 0
      %s38 = sadd.s32 %s37, 1
      %s39 = scalar_select %p36, %s37, %s38
      %p42 = pneg %p36
      %p43 = scmp.eq.s32.totalorder %s13, 1
      %p44 = por %p42, %p43
      %p45 = scmp.ne.s32.totalorder %s37, %s40
      %p46 = scmp.eq.s32.totalorder %s13, 0
      %p47 = por %p45, %p46
      %p48 = scmp.ne.s32.totalorder %s37, %s40
      %p49 = scmp.eq.s32.totalorder %s18, 1
      %p50 = por %p48, %p49
      %p51 = scmp.ne.s32.totalorder %s40, %s41
      %p52 = scmp.eq.s32.totalorder %s18, 0
      %p53 = por %p51, %p52
      %p54 = scmp.ne.s32.totalorder %s40, %s41
      %p55 = scmp.eq.s32.totalorder %s19, 1
      %p56 = por %p54, %p55
      %p58 = scmp.ne.s32.totalorder %s41, %s57
      %p59 = scmp.eq.s32.totalorder %s19, 0
      %p60 = por %p58, %p59
      %s61 = ssub.s32 %s20, %s32
      %s62 = ssub.s32 %s21, %s28
      %s63 = sor.u32 %s61, %s62
      %p64 = scmp.eq.s32.totalorder %s63, 0
      %s66 = sadd.s32 %s65, 1
      %s67 = scalar_select %p64, %s65, %s66
      %p70 = pneg %p64
      %p71 = scmp.eq.s32.totalorder %s13, 1
      %p72 = por %p70, %p71
      %p73 = scmp.ne.s32.totalorder %s65, %s68
      %p74 = scmp.eq.s32.totalorder %s13, 0
      %p75 = por %p73, %p74
      %p76 = scmp.ne.s32.totalorder %s65, %s68
      %p77 = scmp.eq.s32.totalorder %s18, 1
      %p78 = por %p76, %p77
      %p79 = scmp.ne.s32.totalorder %s68, %s69
      %p80 = scmp.eq.s32.totalorder %s18, 0
      %p81 = por %p79, %p80
      %p82 = scmp.ne.s32.totalorder %s68, %s69
      %p83 = scmp.eq.s32.totalorder %s19, 1
      %p84 = por %p82, %p83
      %p86 = scmp.ne.s32.totalorder %s69, %s85
      %p87 = scmp.eq.s32.totalorder %s19, 0
      %p88 = por %p86, %p87
      %p89 = scmp.le.s32.totalorder 1, %s13
      %p90 = scmp.lt.s32.totalorder %s13, 3
      %p91 = pnand %p89, %p90
      %p92 = pneg %p91
      // Predicated region
      $region9: #{tpu_custom_call.1} parent=5 // pred_check
        _
      $region10: #{tpu_custom_call.1} parent=5 // pred_check_branch
        %94 = sbr.rel (%p91) target = $region12
      $region11: #{tpu_custom_call.1} parent=5 // pred_region
        %s95 = ssub.s32 %s13, 1
      $region12: #{tpu_custom_call.1} parent=5 // pred_fallthru
        _
      %p96 = scmp.lt.s32.totalorder %s13, 2
      // Predicated region
      $region13: #{tpu_custom_call.1} parent=5 // pred_check
        %p97 = pneg %p96
      $region14: #{tpu_custom_call.1} parent=5 // pred_check_branch
        %99 = sbr.rel (%p97) target = $region16
      $region15: #{tpu_custom_call.1} parent=5 // pred_region
        // Predicated region
        $region17: #{tpu_custom_call.1} parent=15 // pred_check
          %p100 = pneg %p47
        $region18: #{tpu_custom_call.1} parent=15 // pred_check_branch
          %102 = sbr.rel (%p100) target = $region20
        $region19: #{tpu_custom_call.1} parent=15 // pred_region
          %s103 = sand.u32 %s37, 1
          %s104 = scalar_lea.sflag [#allocation3], %s103
          %s105 = sand.u32 %s37, 1
          %s106 = smul.addr %s105, 8
          %s107 = scalar_lea.vmem [#allocation2], %s106
          %s109 = ssub.s32 128, 128
          %110 = vsyncadd %s104, %s109
          %s111 = sadd.s32 %s21, %s20
          %s112 = smul.addr %s111, 128
          %s113 = scalar_lea.hbm %s0, %s112
          %s115 = sshll.u32 %s107, 4
          %s116 = int_to_ptr.vmem [resolvable:$true] %s115
          %118 = dma.hbm_to_vmem [thread:$0]  %s113, 128, %s116, %s104
        $region20: #{tpu_custom_call.1} parent=15 // pred_fallthru
          _
      $region16: #{tpu_custom_call.1} parent=5 // pred_fallthru
        _
      %p119 = scmp.le.s32.totalorder 1, %s13
      %p120 = scmp.lt.s32.totalorder %s13, 3
      %p121 = pnand %p119, %p120
      %p122 = pneg %p121
      // Predicated region
      $region21: #{tpu_custom_call.1} parent=5 // pred_check
        _
      $region22: #{tpu_custom_call.1} parent=5 // pred_check_branch
        %124 = sbr.rel (%p121) target = $region24
      $region23: #{tpu_custom_call.1} parent=5 // pred_region
        %s125 = ssub.s32 %s13, 1
        %s126 = sand.u32 %s40, 1
        %s127 = scalar_lea.sflag [#allocation3], %s126
        %s128 = sand.u32 %s40, 1
        %s129 = smul.addr %s128, 8
        %s130 = scalar_lea.vmem [#allocation2], %s129
        // Predicated region
        $region25: #{tpu_custom_call.1} parent=23 // pred_check
          %p131 = pneg %p53
        $region26: #{tpu_custom_call.1} parent=23 // pred_check_branch
          %133 = sbr.rel (%p131) target = $region28
        $region27: #{tpu_custom_call.1} parent=23 // pred_region
          %134 = dma.done %s127, 128
        $region28: #{tpu_custom_call.1} parent=23 // pred_fallthru
          _
        %s135 = sand.u32 %s40, 1
        %s136 = scalar_lea.sflag [#allocation3], %s135
        %s137 = sand.u32 %s40, 1
        %s138 = smul.addr %s137, 8
        %s139 = scalar_lea.vmem [#allocation2], %s138
        %p140 = pneg %p53
        %p141 = pneg %p50
        %p142 = pneg %p81
        %p143 = pneg %p78
        %s144 = sand.u32 %s68, 1
        %s145 = scalar_lea.sflag [#allocation4], %s144
        %s146 = sand.u32 %s68, 1
        %s147 = smul.addr %s146, 8
        %s148 = scalar_lea.vmem [#allocation5], %s147
        %v149 = vld [vmem:[%s130] sm:$0xff]
        %vm150 = vcmask 261120
        %v151 = vsel %vm150, %v149, -inf
        %v152 = vrot.slane %v151, 4
        %v153 = vmax.f32 %v151, %v152
        %v154 = vrot.slane %v153, 2
        %v155 = vmax.f32 %v153, %v154
        %v156 = vrot.slane %v155, 1
        %v157 = vmax.f32 %v155, %v156
        %v158 = vsub.f32 %v149, %v157
        %v159 = vmul.f32 %v158, 1.442695
        %v160 = vpow.pop %v159
        %v161 = vsel %vm150, %v160, 0.0
        %v162 = vrot.slane %v161, 4
        %v163 = vadd.f32 %v161, %v162
        %v164 = vrot.slane %v163, 2
        %v165 = vadd.f32 %v163, %v164
        %v166 = vrot.slane %v165, 1
        %v167 = vadd.f32 %v165, %v166
        %v168 = vrcp.pop %v167
        %v169 = vmul.f32 %v167, %v168
        %v170 = vsub.f32 2.0, %v169
        %v171 = vmul.f32 %v168, %v170
        %v172 = vmul.f32 %v167, %v171
        %v173 = vsub.f32 2.0, %v172
        %v174 = vmul.f32 %v171, %v173
        %v175 = vmul.f32 %v160, %v174
        %v176 = vmul.f32 %v175, %v149
        %177 = vst.msk [vmem:[%s148] sm:$0xff] %vm150, %v176
        %s178 = sand.u32 %s68, 1
        %s179 = scalar_lea.sflag [#allocation4], %s178
        %s180 = sand.u32 %s68, 1
        %s181 = smul.addr %s180, 8
        %s182 = scalar_lea.vmem [#allocation5], %s181
        // Predicated region
        $region29: #{tpu_custom_call.1} parent=23 // pred_check
          %p183 = pneg %p78
        $region30: #{tpu_custom_call.1} parent=23 // pred_check_branch
          %185 = sbr.rel (%p183) target = $region32
        $region31: #{tpu_custom_call.1} parent=23 // pred_region
          %s187 = ssub.s32 128, 128
          %188 = vsyncadd %s179, %s187
          %s189 = sadd.s32 %s23, %s22
          %s190 = smul.addr %s189, 128
          %s191 = scalar_lea.hbm %s1, %s190
          %s193 = sshll.u32 %s182, 4
          %s194 = int_to_ptr.vmem [resolvable:$true] %s193
          %196 = dma.vmem_to_hbm [thread:$0]  %s194, 128, %s191, %s179
        $region32: #{tpu_custom_call.1} parent=23 // pred_fallthru
          _
      $region24: #{tpu_custom_call.1} parent=5 // pred_fallthru
        _
      %p197 = scmp.le.s32.totalorder 2, %s13
      // Predicated region
      $region33: #{tpu_custom_call.1} parent=5 // pred_check
        %p198 = pneg %p197
      $region34: #{tpu_custom_call.1} parent=5 // pred_check_branch
        %200 = sbr.rel (%p198) target = $region36
      $region35: #{tpu_custom_call.1} parent=5 // pred_region
        %s201 = ssub.s32 %s13, 2
        // Predicated region
        $region37: #{tpu_custom_call.1} parent=35 // pred_check
          %p202 = pneg %p84
        $region38: #{tpu_custom_call.1} parent=35 // pred_check_branch
          %204 = sbr.rel (%p202) target = $region40
        $region39: #{tpu_custom_call.1} parent=35 // pred_region
          %s205 = sand.u32 %s69, 1
          %s206 = scalar_lea.sflag [#allocation4], %s205
          %s207 = sand.u32 %s69, 1
          %s208 = smul.addr %s207, 8
          %s209 = scalar_lea.vmem [#allocation5], %s208
          %210 = dma.done %s206, 128
        $region40: #{tpu_custom_call.1} parent=35 // pred_fallthru
          _
      $region36: #{tpu_custom_call.1} parent=5 // pred_fallthru
        _
    $region6: #{tpu_custom_call.1} parent=1 // loop_footer
      %s17 = sadd.s32 1, %s13
    $region7: #{tpu_custom_call.1} parent=1 // loop_footer_branch
      %12 = sbr.rel target = $region3
    $region8: #{tpu_custom_call.1} parent=1 // loop_exit
      _
    %211 = vsyncpa [#allocation3], 1
    %s212 = scalar_lea.sflag [#allocation3], 1
    %213 = vsyncpa %s212, 1
    %214 = vsyncpa [#allocation4], 1
    %s215 = scalar_lea.sflag [#allocation4], 1
    %216 = vsyncpa %s215, 1

</llo_original>
